<compile_context>
chip_gen: v5e
topology: v5e:2x2
jax: 0.10.0
libtpu: 0.0.40
codegen_flags: <defaults>
</compile_context>

<pallas_src>
import jax
import jax.numpy as jnp
import numpy as np
from jax.experimental import pallas as pl
from jax.experimental.pallas import tpu as pltpu


_GROUPS = 8                        # batch groups stacked along the sublane axis
_GRANULE = _GROUPS * 128           # 1024: minimum batch tile (8 groups x 128 lanes)
_MAX_TB = 65536                    # ~0.3 KB VMEM per element -> ~20 MiB, under the limit
_VMEM_LIMIT = 48 * 1024 * 1024     # explicit scoped-VMEM cap (fits v7x's 64 MiB physical)

_P_ROWS, _P_COLS = 512, 256        # packed-parameter buffer (single resident DMA, 512 KB)
_IN_ROWS = _GROUPS * 4             # 32  packed input rows   (4 features per group)
_OUT_ROWS = _GROUPS * 2            # 16  packed output rows  (2 Q-values per group)


# Packed-parameter layout inside the (512, 256) f32 buffer:
#   rows   0:128, cols 0:32  -> block-diag of 8 copies of W1 [16,4];  col 128 = b1 tiled x8
#   rows 128:256, cols 0:128 -> block-diag of 8 copies of W2 [16,16]; col 128 = b2 tiled x8
#   rows 256:384, cols 0:128 -> block-diag of 8 copies of W3 [16,16]; col 128 = b3 tiled x8
#   rows 384:400, cols 0:128 -> block-diag of 8 copies of W4 [2,16];  col 128 = b4 tiled x8
def _mlp_kernel(p_ref, x_ref, o_ref):
    """One batch tile of the 4-layer MLP in the block-diagonal group layout."""
    x = x_ref[...]                                   # [32, L]  (4 features x 8 groups)

    w1 = p_ref[0:128, 0:32]
    b1 = p_ref[0:128, 128:129]
    w2 = p_ref[128:256, 0:128]
    b2 = p_ref[128:256, 128:129]
    w3 = p_ref[256:384, 0:128]
    b3 = p_ref[256:384, 128:129]
    w4 = p_ref[384:400, 0:128]
    b4 = p_ref[384:400, 128:129]

    h = jnp.maximum(jnp.dot(w1, x, preferred_element_type=jnp.float32) + b1, 0.0)
    h = jnp.maximum(jnp.dot(w2, h, preferred_element_type=jnp.float32) + b2, 0.0)
    h = jnp.maximum(jnp.dot(w3, h, preferred_element_type=jnp.float32) + b3, 0.0)
    out = jnp.dot(w4, h, preferred_element_type=jnp.float32) + b4      # [16, L]
    o_ref[...] = out.astype(o_ref.dtype)


def _round_up(n, m):
    return ((n + m - 1) // m) * m


def _choose_tb(batch, tb_req):
    """Sanitize the batch tile: multiple of 1024, VMEM-capped, >=2 grid steps if possible."""
    b_min = _round_up(max(int(batch), 1), _GRANULE)
    tb = _round_up(min(max(int(tb_req), _GRANULE), _MAX_TB), _GRANULE)
    tb = min(tb, b_min)
    if tb == b_min and b_min >= 2 * _GRANULE:
        # Split into at least 2 grid steps so v7x's two TensorCores both get work.
        tb = _round_up((b_min + 1) // 2, _GRANULE)
    return tb


def boltzman_forward(x, packed_params, *, tb=16384):
    """x: [B, 4] float32 -> Q-values [B, 2] float32."""
    x = x.astype(jnp.float32)
    B = x.shape[0]

    tb = _choose_tb(B, tb)
    L = tb // _GROUPS                       # lanes per tile (multiple of 128)
    b_pad = _round_up(B, tb)
    n_tiles = b_pad // tb
    C = b_pad // _GROUPS                    # total packed columns

    # Pack x [B,4] -> [32, C]: batch element b = i*tb + g*L + l lands at
    # row 4*g + feature, column i*L + l.  (A producer emitting this layout
    # directly would avoid this extra HBM pass.)
    x_pad = jnp.pad(x, ((0, b_pad - B), (0, 0)))                       # [b_pad, 4]
    x_packed = jnp.transpose(
        x_pad.reshape(n_tiles, _GROUPS, L, 4), (1, 3, 0, 2)            # [g, f, i, l]
    ).reshape(_IN_ROWS, C)                                             # [32, C]

    out = pl.pallas_call(
        _mlp_kernel,
        out_shape=jax.ShapeDtypeStruct((_OUT_ROWS, C), jnp.float32),
        grid=(n_tiles,),
        in_specs=[
            # Packed params: constant index_map -> VMEM-resident, single DMA.
            pl.BlockSpec((_P_ROWS, _P_COLS), lambda i: (0, 0)),
            # Input tile: batch on the lane axis, streamed per grid step.
            pl.BlockSpec((_IN_ROWS, L), lambda i: (0, i)),
        ],
        out_specs=pl.BlockSpec((_OUT_ROWS, L), lambda i: (0, i)),
        compiler_params=pltpu.CompilerParams(
            dimension_semantics=("parallel",),
            vmem_limit_bytes=_VMEM_LIMIT,
        ),
    )(packed_params, x_packed)                                         # [16, C]

    # Unpack [16, C] -> [B, 2]: row 2*g + a, col i*L + l -> Q[i*tb + g*L + l, a].
    q = jnp.transpose(
        out.reshape(_GROUPS, 2, n_tiles, L), (2, 0, 3, 1)              # [i, g, l, a]
    ).reshape(b_pad, 2)
    return q[:B]


# ----------------------------- parameter handling -----------------------------

def _xavier_uniform(key, fan_out, fan_in):
    """Matches torch.nn.init.xavier_uniform_ on a (out, in) weight."""
    limit = np.sqrt(6.0 / (fan_in + fan_out))
    return jax.random.uniform(key, (fan_out, fan_in), jnp.float32, -limit, limit)


def _linear_bias(key, fan_in, fan_out):
    """Matches PyTorch default nn.Linear bias init: U(-1/sqrt(fan_in), 1/sqrt(fan_in))."""
    bound = 1.0 / np.sqrt(fan_in)
    return jax.random.uniform(key, (fan_out,), jnp.float32, -bound, bound)


def init_params(key):
    keys = jax.random.split(key, 8)
    dims = [(4, 16), (16, 16), (16, 16), (16, 2)]
    params = []
    for i, (fi, fo) in enumerate(dims):
        w = _xavier_uniform(keys[2 * i], fo, fi)     # [out, in] like torch
        b = _linear_bias(keys[2 * i + 1], fi, fo)    # [out]
        params.append((w, b))
    return params


def _block_diag(w, n):
    fo, fi = w.shape
    buf = np.zeros((n * fo, n * fi), np.float32)
    for g in range(n):
        buf[g * fo:(g + 1) * fo, g * fi:(g + 1) * fi] = w
    return buf


def pack_params(params):
    """Pack the 4 (W [out,in], b [out]) pairs block-diagonally into one (512,256) buffer."""
    buf = np.zeros((_P_ROWS, _P_COLS), np.float32)
    row_starts = [0, 128, 256, 384]
    for (w, b), r0 in zip(params, row_starts):
        w = np.asarray(w, np.float32)
        b = np.asarray(b, np.float32)
        fo, _ = w.shape
        wd = _block_diag(w, _GROUPS)                          # [8*fo, 8*fi]
        buf[r0:r0 + wd.shape[0], 0:wd.shape[1]] = wd
        buf[r0:r0 + _GROUPS * fo, 128] = np.tile(b, _GROUPS)  # bias column
    return jnp.asarray(buf)


def reference_forward(x, params):
    """Plain-JAX reference (PyTorch convention: y = x @ W.T + b)."""
    h = x
    for i, (w, b) in enumerate(params):
        h = h @ w.T + b
        if i < len(params) - 1:
            h = jnp.maximum(h, 0.0)
    return h


if __name__ == "__main__":
    key = jax.random.PRNGKey(0)
    pkey, xkey, xkey2 = jax.random.split(key, 3)

    params = init_params(pkey)
    packed = pack_params(params)

    forward = jax.jit(boltzman_forward, static_argnames=("tb",))

    # Small demo batch (module expects state dim 4).
    batch = 8
    x = jax.random.normal(xkey, (batch, 4), dtype=jnp.float32)
    q = jax.block_until_ready(forward(x, packed))
    q_ref = reference_forward(x, params)
    np.testing.assert_allclose(np.asarray(q), np.asarray(q_ref), rtol=1e-5, atol=1e-5)

    # Exercise the multi-tile grid path (2 grid steps + batch padding).
    batch2 = 2500
    x2 = jax.random.normal(xkey2, (batch2, 4), dtype=jnp.float32)
    q2 = jax.block_until_ready(forward(x2, packed, tb=2048))
    q2_ref = reference_forward(x2, params)
    np.testing.assert_allclose(np.asarray(q2), np.asarray(q2_ref), rtol=1e-5, atol=1e-5)

    print("KERNEL_OK")
</pallas_src>

<mosaic_0001>
module attributes {stable_mosaic.version = 11 : i64} {
  func.func @_mlp_kernel(%arg0: i32, %arg1: memref<512x256xf32, #tpu.memory_space<vmem>>, %arg2: memref<32x128xf32, #tpu.memory_space<vmem>>, %arg3: memref<16x128xf32, #tpu.memory_space<vmem>>) attributes {dimension_semantics = [#tpu.dimension_semantics<parallel>], iteration_bounds = array<i64: 1>, scalar_prefetch = 0 : i64, scratch_operands = 0 : i64, tpu.core_type = #tpu.core_type<tc>, window_params = [{pipeline_mode = #tpu.pipeline_mode<synchronous>, transform_indices = @transform_0, window_bounds = array<i64: 512, 256>}, {transform_indices = @transform_1, window_bounds = array<i64: 32, 128>}, {transform_indices = @transform_2, window_bounds = array<i64: 16, 128>}]} {
    %c0 = arith.constant 0 : index
    %c0_0 = arith.constant 0 : index
    %0 = vector.load %arg2[%c0, %c0_0] : memref<32x128xf32, #tpu.memory_space<vmem>>, vector<32x128xf32>
    %c0_1 = arith.constant 0 : index
    %c0_2 = arith.constant 0 : index
    %1 = vector.load %arg1[%c0_1, %c0_2] : memref<512x256xf32, #tpu.memory_space<vmem>>, vector<128x32xf32>
    %c0_3 = arith.constant 0 : index
    %c128 = arith.constant 128 : index
    %2 = vector.load %arg1[%c0_3, %c128] : memref<512x256xf32, #tpu.memory_space<vmem>>, vector<128x1xf32>
    %c128_4 = arith.constant 128 : index
    %c0_5 = arith.constant 0 : index
    %3 = vector.load %arg1[%c128_4, %c0_5] : memref<512x256xf32, #tpu.memory_space<vmem>>, vector<128x128xf32>
    %c128_6 = arith.constant 128 : index
    %c128_7 = arith.constant 128 : index
    %4 = vector.load %arg1[%c128_6, %c128_7] : memref<512x256xf32, #tpu.memory_space<vmem>>, vector<128x1xf32>
    %c256 = arith.constant 256 : index
    %c0_8 = arith.constant 0 : index
    %5 = vector.load %arg1[%c256, %c0_8] : memref<512x256xf32, #tpu.memory_space<vmem>>, vector<128x128xf32>
    %c256_9 = arith.constant 256 : index
    %c128_10 = arith.constant 128 : index
    %6 = vector.load %arg1[%c256_9, %c128_10] : memref<512x256xf32, #tpu.memory_space<vmem>>, vector<128x1xf32>
    %c384 = arith.constant 384 : index
    %c0_11 = arith.constant 0 : index
    %7 = vector.load %arg1[%c384, %c0_11] : memref<512x256xf32, #tpu.memory_space<vmem>>, vector<16x128xf32>
    %c384_12 = arith.constant 384 : index
    %c128_13 = arith.constant 128 : index
    %8 = vector.load %arg1[%c384_12, %c128_13] : memref<512x256xf32, #tpu.memory_space<vmem>>, vector<16x1xf32>
    %cst = arith.constant dense<0.000000e+00> : vector<128x128xf32>
    %9 = tpu.matmul %1, %0, %cst {dimension_numbers = #tpu.dot_dimension_numbers<[1], [0], [0], [1], [0, 0, 1, 1], [], []>} : vector<128x32xf32>, vector<32x128xf32>, vector<128x128xf32> -> vector<128x128xf32>
    %10 = vector.broadcast %2 : vector<128x1xf32> to vector<128x128xf32>
    %11 = arith.addf %9, %10 : vector<128x128xf32>
    %cst_14 = arith.constant 0.000000e+00 : f32
    %12 = vector.broadcast %cst_14 : f32 to vector<128x128xf32>
    %13 = arith.maximumf %11, %12 : vector<128x128xf32>
    %cst_15 = arith.constant dense<0.000000e+00> : vector<128x128xf32>
    %14 = tpu.matmul %3, %13, %cst_15 {dimension_numbers = #tpu.dot_dimension_numbers<[1], [0], [0], [1], [0, 0, 1, 1], [], []>} : vector<128x128xf32>, vector<128x128xf32>, vector<128x128xf32> -> vector<128x128xf32>
    %15 = vector.broadcast %4 : vector<128x1xf32> to vector<128x128xf32>
    %16 = arith.addf %14, %15 : vector<128x128xf32>
    %cst_16 = arith.constant 0.000000e+00 : f32
    %17 = vector.broadcast %cst_16 : f32 to vector<128x128xf32>
    %18 = arith.maximumf %16, %17 : vector<128x128xf32>
    %cst_17 = arith.constant dense<0.000000e+00> : vector<128x128xf32>
    %19 = tpu.matmul %5, %18, %cst_17 {dimension_numbers = #tpu.dot_dimension_numbers<[1], [0], [0], [1], [0, 0, 1, 1], [], []>} : vector<128x128xf32>, vector<128x128xf32>, vector<128x128xf32> -> vector<128x128xf32>
    %20 = vector.broadcast %6 : vector<128x1xf32> to vector<128x128xf32>
    %21 = arith.addf %19, %20 : vector<128x128xf32>
    %cst_18 = arith.constant 0.000000e+00 : f32
    %22 = vector.broadcast %cst_18 : f32 to vector<128x128xf32>
    %23 = arith.maximumf %21, %22 : vector<128x128xf32>
    %cst_19 = arith.constant dense<0.000000e+00> : vector<16x128xf32>
    %24 = tpu.matmul %7, %23, %cst_19 {dimension_numbers = #tpu.dot_dimension_numbers<[1], [0], [0], [1], [0, 0, 1, 1], [], []>} : vector<16x128xf32>, vector<128x128xf32>, vector<16x128xf32> -> vector<16x128xf32>
    %25 = vector.broadcast %8 : vector<16x1xf32> to vector<16x128xf32>
    %26 = arith.addf %24, %25 : vector<16x128xf32>
    %c0_20 = arith.constant 0 : index
    %c0_21 = arith.constant 0 : index
    %27 = vector.load %arg3[%c0_20, %c0_21] : memref<16x128xf32, #tpu.memory_space<vmem>>, vector<16x128xf32>
    tpu.vector_store %arg3[%c0_20, %c0_21], %26 {strides = array<i32>} : memref<16x128xf32, #tpu.memory_space<vmem>>, vector<16x128xf32>,
    return
  }
  func.func @transform_0(%arg0: i32) -> (i32, i32) {
    %c0_i32 = arith.constant 0 : i32
    %c0_i32_0 = arith.constant 0 : i32
    %c0_i32_1 = arith.constant 0 : i32
    return %c0_i32, %c0_i32_0 : i32, i32
  }
  func.func @transform_1(%arg0: i32) -> (i32, i32) {
    %c0_i32 = arith.constant 0 : i32
    %c0_i32_0 = arith.constant 0 : i32
    return %c0_i32, %arg0 : i32, i32
  }
  func.func @transform_2(%arg0: i32) -> (i32, i32) {
    %c0_i32 = arith.constant 0 : i32
    %c0_i32_0 = arith.constant 0 : i32
    return %c0_i32, %arg0 : i32, i32
  }
}

</mosaic_0001>

<llo_original>
// kernel: boltzman_forward.1
$region0: #{boltzman_forward.1}
  #allocation0 [shape = 'u32[]', space=smem, size = 0x4, offset = 0x4, fixed_abs, tag = 'smem constant byte address 0x4 - core index']
  #allocation1 [shape = 'u32[72,128]{1,0:T(1,128)}', space=vmem, size = 0x9000, scoped, tag = 'internal scratch']
  %s0 = inlined_call_operand.hbm [shape: f32[512,256], index: 0, kind: input, shape index: {}]
  %s1 = inlined_call_operand.vmem [shape: f32[32,128], index: 1, kind: input, shape index: {}]
  %s2 = inlined_call_operand.vmem [shape: f32[16,128], index: 2, kind: output, shape index: {}]
  %s3 = sld [smem:[#allocation0]]
  $region22: #{boltzman_forward.1} parent=0
    _
  %s5 = ssub.s32 1, %s3
  %s6 = scalar_select 0, %s5, %s3
  $region1: #{boltzman_forward.1} parent=0
    #allocation2 [shape = 'u8[524288]{0}', space=vmem, size = 0x80000, scoped, tag = 'input window, operand 0, single buffered']
    #allocation3 [shape = 's32[1]{0}', space=sflag, size = 0x4, scoped, tag = 'scoped memory for boltzman_forward.1']
    %7 = vsyncpa [#allocation3], 0
    // Predicated region
    $region2: #{boltzman_forward.1} parent=1 // pred_check
      _
    $region3: #{boltzman_forward.1} parent=1 // pred_check_branch
      %9 = sbr.rel (0) target = $region5
    $region4: #{boltzman_forward.1} parent=1 // pred_region
      %11 = vsyncadd [#allocation3], 0
      %s12 = sshll.u32 %s0, 4
      %s13 = int_to_ptr.hbm [resolvable:$true] %s12
      %s14 = sshll.u32 [#allocation2], 4
      %s15 = int_to_ptr.vmem [resolvable:$true] %s14
      %20 = dma.hbm_to_vmem [thread:$0]  %s13, 16384, %s15, [#allocation3], 256, 256, 16
    $region5: #{boltzman_forward.1} parent=1 // pred_fallthru
      _
    // Predicated region
    $region6: #{boltzman_forward.1} parent=1 // pred_check
      _
    $region7: #{boltzman_forward.1} parent=1 // pred_check_branch
      %22 = sbr.rel (0) target = $region9
    $region8: #{boltzman_forward.1} parent=1 // pred_region
      _
    $region9: #{boltzman_forward.1} parent=1 // pred_fallthru
      _
    // Predicated region
    $region10: #{boltzman_forward.1} parent=1 // pred_check
      _
    $region11: #{boltzman_forward.1} parent=1 // pred_check_branch
      %24 = sbr.rel (0) target = $region13
    $region12: #{boltzman_forward.1} parent=1 // pred_region
      %26 = dma.done [#allocation3], 16384
    $region13: #{boltzman_forward.1} parent=1 // pred_fallthru
      _
    %v27 = vld [vmem:[%s1] sm:$0xff]
    %v28 = vld [vmem:[%s1 + $0x8] sm:$0xff]
    %v29 = vld [vmem:[%s1 + $0x10] sm:$0xff]
    %v30 = vld [vmem:[%s1 + $0x18] sm:$0xff]
    %v31 = vld [vmem:[#allocation2] sm:$0xff]
    %v32 = vld [vmem:[#allocation2 + $0x10] sm:$0xff]
    %v33 = vld [vmem:[#allocation2 + $0x20] sm:$0xff]
    %v34 = vld [vmem:[#allocation2 + $0x30] sm:$0xff]
    %v35 = vld [vmem:[#allocation2 + $0x40] sm:$0xff]
    %v36 = vld [vmem:[#allocation2 + $0x50] sm:$0xff]
    %v37 = vld [vmem:[#allocation2 + $0x60] sm:$0xff]
    %v38 = vld [vmem:[#allocation2 + $0x70] sm:$0xff]
    %v39 = vld [vmem:[#allocation2 + $0x80] sm:$0xff]
    %v40 = vld [vmem:[#allocation2 + $0x90] sm:$0xff]
    %v41 = vld [vmem:[#allocation2 + $0xa0] sm:$0xff]
    %v42 = vld [vmem:[#allocation2 + $0xb0] sm:$0xff]
    %v43 = vld [vmem:[#allocation2 + $0xc0] sm:$0xff]
    %v44 = vld [vmem:[#allocation2 + $0xd0] sm:$0xff]
    %v45 = vld [vmem:[#allocation2 + $0xe0] sm:$0xff]
    %v46 = vld [vmem:[#allocation2 + $0xf0] sm:$0xff]
    %v47 = vld [vmem:[#allocation2 + $0x8] sm:$0xff]
    %v48 = vld [vmem:[#allocation2 + $0x18] sm:$0xff]
    %v49 = vld [vmem:[#allocation2 + $0x28] sm:$0xff]
    %v50 = vld [vmem:[#allocation2 + $0x38] sm:$0xff]
    %v51 = vld [vmem:[#allocation2 + $0x48] sm:$0xff]
    %v52 = vld [vmem:[#allocation2 + $0x58] sm:$0xff]
    %v53 = vld [vmem:[#allocation2 + $0x68] sm:$0xff]
    %v54 = vld [vmem:[#allocation2 + $0x78] sm:$0xff]
    %v55 = vld [vmem:[#allocation2 + $0x88] sm:$0xff]
    %v56 = vld [vmem:[#allocation2 + $0x98] sm:$0xff]
    %v57 = vld [vmem:[#allocation2 + $0xa8] sm:$0xff]
    %v58 = vld [vmem:[#allocation2 + $0xb8] sm:$0xff]
    %v59 = vld [vmem:[#allocation2 + $0xc8] sm:$0xff]
    %v60 = vld [vmem:[#allocation2 + $0xd8] sm:$0xff]
    %v61 = vld [vmem:[#allocation2 + $0xe8] sm:$0xff]
    %v62 = vld [vmem:[#allocation2 + $0xf8] sm:$0xff]
    %v63 = vld [vmem:[#allocation2 + $0x100] sm:$0xff]
    %v64 = vld [vmem:[#allocation2 + $0x110] sm:$0xff]
    %v65 = vld [vmem:[#allocation2 + $0x120] sm:$0xff]
    %v66 = vld [vmem:[#allocation2 + $0x130] sm:$0xff]
    %v67 = vld [vmem:[#allocation2 + $0x140] sm:$0xff]
    %v68 = vld [vmem:[#allocation2 + $0x150] sm:$0xff]
    %v69 = vld [vmem:[#allocation2 + $0x160] sm:$0xff]
    %v70 = vld [vmem:[#allocation2 + $0x170] sm:$0xff]
    %v71 = vld [vmem:[#allocation2 + $0x180] sm:$0xff]
    %v72 = vld [vmem:[#allocation2 + $0x190] sm:$0xff]
    %v73 = vld [vmem:[#allocation2 + $0x1a0] sm:$0xff]
    %v74 = vld [vmem:[#allocation2 + $0x1b0] sm:$0xff]
    %v75 = vld [vmem:[#allocation2 + $0x1c0] sm:$0xff]
    %v76 = vld [vmem:[#allocation2 + $0x1d0] sm:$0xff]
    %v77 = vld [vmem:[#allocation2 + $0x1e0] sm:$0xff]
    %v78 = vld [vmem:[#allocation2 + $0x1f0] sm:$0xff]
    %v79 = vld [vmem:[#allocation2 + $0x108] sm:$0xff]
    %v80 = vld [vmem:[#allocation2 + $0x118] sm:$0xff]
    %v81 = vld [vmem:[#allocation2 + $0x128] sm:$0xff]
    %v82 = vld [vmem:[#allocation2 + $0x138] sm:$0xff]
    %v83 = vld [vmem:[#allocation2 + $0x148] sm:$0xff]
    %v84 = vld [vmem:[#allocation2 + $0x158] sm:$0xff]
    %v85 = vld [vmem:[#allocation2 + $0x168] sm:$0xff]
    %v86 = vld [vmem:[#allocation2 + $0x178] sm:$0xff]
    %v87 = vld [vmem:[#allocation2 + $0x188] sm:$0xff]
    %v88 = vld [vmem:[#allocation2 + $0x198] sm:$0xff]
    %v89 = vld [vmem:[#allocation2 + $0x1a8] sm:$0xff]
    %v90 = vld [vmem:[#allocation2 + $0x1b8] sm:$0xff]
    %v91 = vld [vmem:[#allocation2 + $0x1c8] sm:$0xff]
    %v92 = vld [vmem:[#allocation2 + $0x1d8] sm:$0xff]
    %v93 = vld [vmem:[#allocation2 + $0x1e8] sm:$0xff]
    %v94 = vld [vmem:[#allocation2 + $0x1f8] sm:$0xff]
    %v95 = vld [vmem:[#allocation2 + $0x200] sm:$0xff]
    %v96 = vld [vmem:[#allocation2 + $0x210] sm:$0xff]
    %v97 = vld [vmem:[#allocation2 + $0x220] sm:$0xff]
    %v98 = vld [vmem:[#allocation2 + $0x230] sm:$0xff]
    %v99 = vld [vmem:[#allocation2 + $0x240] sm:$0xff]
    %v100 = vld [vmem:[#allocation2 + $0x250] sm:$0xff]
    %v101 = vld [vmem:[#allocation2 + $0x260] sm:$0xff]
    %v102 = vld [vmem:[#allocation2 + $0x270] sm:$0xff]
    %v103 = vld [vmem:[#allocation2 + $0x280] sm:$0xff]
    %v104 = vld [vmem:[#allocation2 + $0x290] sm:$0xff]
    %v105 = vld [vmem:[#allocation2 + $0x2a0] sm:$0xff]
    %v106 = vld [vmem:[#allocation2 + $0x2b0] sm:$0xff]
    %v107 = vld [vmem:[#allocation2 + $0x2c0] sm:$0xff]
    %v108 = vld [vmem:[#allocation2 + $0x2d0] sm:$0xff]
    %v109 = vld [vmem:[#allocation2 + $0x2e0] sm:$0xff]
    %v110 = vld [vmem:[#allocation2 + $0x2f0] sm:$0xff]
    %v111 = vld [vmem:[#allocation2 + $0x208] sm:$0xff]
    %v112 = vld [vmem:[#allocation2 + $0x218] sm:$0xff]
    %v113 = vld [vmem:[#allocation2 + $0x228] sm:$0xff]
    %v114 = vld [vmem:[#allocation2 + $0x238] sm:$0xff]
    %v115 = vld [vmem:[#allocation2 + $0x248] sm:$0xff]
    %v116 = vld [vmem:[#allocation2 + $0x258] sm:$0xff]
    %v117 = vld [vmem:[#allocation2 + $0x268] sm:$0xff]
    %v118 = vld [vmem:[#allocation2 + $0x278] sm:$0xff]
    %v119 = vld [vmem:[#allocation2 + $0x288] sm:$0xff]
    %v120 = vld [vmem:[#allocation2 + $0x298] sm:$0xff]
    %v121 = vld [vmem:[#allocation2 + $0x2a8] sm:$0xff]
    %v122 = vld [vmem:[#allocation2 + $0x2b8] sm:$0xff]
    %v123 = vld [vmem:[#allocation2 + $0x2c8] sm:$0xff]
    %v124 = vld [vmem:[#allocation2 + $0x2d8] sm:$0xff]
    %v125 = vld [vmem:[#allocation2 + $0x2e8] sm:$0xff]
    %v126 = vld [vmem:[#allocation2 + $0x2f8] sm:$0xff]
    %v127 = vld [vmem:[#allocation2 + $0x300] sm:$0xff]
    %v128 = vld [vmem:[#allocation2 + $0x310] sm:$0xff]
    %v129 = vld [vmem:[#allocation2 + $0x308] sm:$0xff]
    %v130 = vld [vmem:[#allocation2 + $0x318] sm:$0xff]
    %132 = vset.pattern.permute.xlu0 0
    %133 = vperm.xlu0 %132, %v47
    %v134 = vpop.permute.xlu0 %133
    %137 = vset.pattern.permute.xlu0 0
    %138 = vperm.xlu0 %137, %v48
    %v139 = vpop.permute.xlu0 %138
    %142 = vset.pattern.permute.xlu0 0
    %143 = vperm.xlu0 %142, %v49
    %v144 = vpop.permute.xlu0 %143
    %147 = vset.pattern.permute.xlu0 0
    %148 = vperm.xlu0 %147, %v50
    %v149 = vpop.permute.xlu0 %148
    %152 = vset.pattern.permute.xlu0 0
    %153 = vperm.xlu0 %152, %v51
    %v154 = vpop.permute.xlu0 %153
    %157 = vset.pattern.permute.xlu0 0
    %158 = vperm.xlu0 %157, %v52
    %v159 = vpop.permute.xlu0 %158
    %162 = vset.pattern.permute.xlu0 0
    %163 = vperm.xlu0 %162, %v53
    %v164 = vpop.permute.xlu0 %163
    %167 = vset.pattern.permute.xlu0 0
    %168 = vperm.xlu0 %167, %v54
    %v169 = vpop.permute.xlu0 %168
    %172 = vset.pattern.permute.xlu0 0
    %173 = vperm.xlu0 %172, %v55
    %v174 = vpop.permute.xlu0 %173
    %177 = vset.pattern.permute.xlu0 0
    %178 = vperm.xlu0 %177, %v56
    %v179 = vpop.permute.xlu0 %178
    %182 = vset.pattern.permute.xlu0 0
    %183 = vperm.xlu0 %182, %v57
    %v184 = vpop.permute.xlu0 %183
    %187 = vset.pattern.permute.xlu0 0
    %188 = vperm.xlu0 %187, %v58
    %v189 = vpop.permute.xlu0 %188
    %192 = vset.pattern.permute.xlu0 0
    %193 = vperm.xlu0 %192, %v59
    %v194 = vpop.permute.xlu0 %193
    %197 = vset.pattern.permute.xlu0 0
    %198 = vperm.xlu0 %197, %v60
    %v199 = vpop.permute.xlu0 %198
    %202 = vset.pattern.permute.xlu0 0
    %203 = vperm.xlu0 %202, %v61
    %v204 = vpop.permute.xlu0 %203
    %207 = vset.pattern.permute.xlu0 0
    %208 = vperm.xlu0 %207, %v62
    %v209 = vpop.permute.xlu0 %208
    %vm211 = vcmask 261120
    %v213 = vsel %vm211, %v31, 0
    %v216 = vsel %vm211, %v32, 0
    %v219 = vsel %vm211, %v33, 0
    %v222 = vsel %vm211, %v34, 0
    %v225 = vsel %vm211, %v35, 0
    %v228 = vsel %vm211, %v36, 0
    %v231 = vsel %vm211, %v37, 0
    %v234 = vsel %vm211, %v38, 0
    %v237 = vsel %vm211, %v39, 0
    %v240 = vsel %vm211, %v40, 0
    %v243 = vsel %vm211, %v41, 0
    %v246 = vsel %vm211, %v42, 0
    %v249 = vsel %vm211, %v43, 0
    %v252 = vsel %vm211, %v44, 0
    %v255 = vsel %vm211, %v45, 0
    %v258 = vsel %vm211, %v46, 0
    %260 = vmatpush.msra.mxu0 0.0
    %261 = vmatpush.msra.mxu0 0.0
    %262 = vmatpush.msra.mxu0 0.0
    %263 = vmatpush.msra.mxu0 0.0
    %264 = vmatpush.msra.mxu0 0.0
    %265 = vmatpush.msra.mxu0 0.0
    %266 = vmatpush.msra.mxu0 0.0
    %267 = vmatpush.msra.mxu0 0.0
    %268 = vmatpush.msra.mxu0 0.0
    %269 = vmatpush.msra.mxu0 0.0
    %270 = vmatpush.msra.mxu0 0.0
    %271 = vmatpush.msra.mxu0 0.0
    %272 = vmatpush.msra.mxu0 %v30
    %273 = vmatpush.msra.mxu0 %v29
    %274 = vmatpush.msra.mxu0 %v28
    %275 = vmatpush.msra.mxu0 %v27
    %276 = vmatmul.f32.gmra.mxu0 %v213
    %v277 = vpop.f32.mrf.mxu0
    %v278 = vadd.f32 %v134, %v277
    %279 = vmatmul.f32.gmra.mxu0 %v216
    %v280 = vpop.f32.mrf.mxu0
    %v281 = vadd.f32 %v139, %v280
    %282 = vmatmul.f32.gmra.mxu0 %v219
    %v283 = vpop.f32.mrf.mxu0
    %v284 = vadd.f32 %v144, %v283
    %285 = vmatmul.f32.gmra.mxu0 %v222
    %v286 = vpop.f32.mrf.mxu0
    %v287 = vadd.f32 %v149, %v286
    %288 = vmatmul.f32.gmra.mxu0 %v225
    %v289 = vpop.f32.mrf.mxu0
    %v290 = vadd.f32 %v154, %v289
    %291 = vmatmul.f32.gmra.mxu0 %v228
    %v292 = vpop.f32.mrf.mxu0
    %v293 = vadd.f32 %v159, %v292
    %294 = vmatmul.f32.gmra.mxu0 %v231
    %v295 = vpop.f32.mrf.mxu0
    %v296 = vadd.f32 %v164, %v295
    %297 = vmatmul.f32.gmra.mxu0 %v234
    %v298 = vpop.f32.mrf.mxu0
    %v299 = vadd.f32 %v169, %v298
    %300 = vmatmul.f32.gmra.mxu0 %v237
    %v301 = vpop.f32.mrf.mxu0
    %v302 = vadd.f32 %v174, %v301
    %303 = vmatmul.f32.gmra.mxu0 %v240
    %v304 = vpop.f32.mrf.mxu0
    %v305 = vadd.f32 %v179, %v304
    %306 = vmatmul.f32.gmra.mxu0 %v243
    %v307 = vpop.f32.mrf.mxu0
    %v308 = vadd.f32 %v184, %v307
    %309 = vmatmul.f32.gmra.mxu0 %v246
    %v310 = vpop.f32.mrf.mxu0
    %v311 = vadd.f32 %v189, %v310
    %312 = vmatmul.f32.gmra.mxu0 %v249
    %v313 = vpop.f32.mrf.mxu0
    %v314 = vadd.f32 %v194, %v313
    %315 = vmatmul.f32.gmra.mxu0 %v252
    %v316 = vpop.f32.mrf.mxu0
    %v317 = vadd.f32 %v199, %v316
    %318 = vmatmul.f32.gmra.mxu0 %v255
    %v319 = vpop.f32.mrf.mxu0
    %v320 = vadd.f32 %v204, %v319
    %321 = vmatmul.f32.gmra.mxu0 %v258
    %v322 = vpop.f32.mrf.mxu0
    %v323 = vadd.f32 %v209, %v322
    %324 = vdwg.mxu0
    %v325 = vmax.f32 %v278, 0.0
    %v326 = vmax.f32 %v281, 0.0
    %v327 = vmax.f32 %v284, 0.0
    %v328 = vmax.f32 %v287, 0.0
    %v329 = vmax.f32 %v290, 0.0
    %v330 = vmax.f32 %v293, 0.0
    %v331 = vmax.f32 %v296, 0.0
    %v332 = vmax.f32 %v299, 0.0
    %v333 = vmax.f32 %v302, 0.0
    %v334 = vmax.f32 %v305, 0.0
    %v335 = vmax.f32 %v308, 0.0
    %v336 = vmax.f32 %v311, 0.0
    %v337 = vmax.f32 %v314, 0.0
    %v338 = vmax.f32 %v317, 0.0
    %v339 = vmax.f32 %v320, 0.0
    %v340 = vmax.f32 %v323, 0.0
    %342 = vset.pattern.permute.xlu0 0
    %343 = vperm.xlu0 %342, %v79
    %v344 = vpop.permute.xlu0 %343
    %347 = vset.pattern.permute.xlu0 0
    %348 = vperm.xlu0 %347, %v80
    %v349 = vpop.permute.xlu0 %348
    %352 = vset.pattern.permute.xlu0 0
    %353 = vperm.xlu0 %352, %v81
    %v354 = vpop.permute.xlu0 %353
    %357 = vset.pattern.permute.xlu0 0
    %358 = vperm.xlu0 %357, %v82
    %v359 = vpop.permute.xlu0 %358
    %362 = vset.pattern.permute.xlu0 0
    %363 = vperm.xlu0 %362, %v83
    %v364 = vpop.permute.xlu0 %363
    %367 = vset.pattern.permute.xlu0 0
    %368 = vperm.xlu0 %367, %v84
    %v369 = vpop.permute.xlu0 %368
    %372 = vset.pattern.permute.xlu0 0
    %373 = vperm.xlu0 %372, %v85
    %v374 = vpop.permute.xlu0 %373
    %377 = vset.pattern.permute.xlu0 0
    %378 = vperm.xlu0 %377, %v86
    %v379 = vpop.permute.xlu0 %378
    %382 = vset.pattern.permute.xlu0 0
    %383 = vperm.xlu0 %382, %v87
    %v384 = vpop.permute.xlu0 %383
    %387 = vset.pattern.permute.xlu0 0
    %388 = vperm.xlu0 %387, %v88
    %v389 = vpop.permute.xlu0 %388
    %392 = vset.pattern.permute.xlu0 0
    %393 = vperm.xlu0 %392, %v89
    %v394 = vpop.permute.xlu0 %393
    %397 = vset.pattern.permute.xlu0 0
    %398 = vperm.xlu0 %397, %v90
    %v399 = vpop.permute.xlu0 %398
    %402 = vset.pattern.permute.xlu0 0
    %403 = vperm.xlu0 %402, %v91
    %v404 = vpop.permute.xlu0 %403
    %407 = vset.pattern.permute.xlu0 0
    %408 = vperm.xlu0 %407, %v92
    %v409 = vpop.permute.xlu0 %408
    %412 = vset.pattern.permute.xlu0 0
    %413 = vperm.xlu0 %412, %v93
    %v414 = vpop.permute.xlu0 %413
    %417 = vset.pattern.permute.xlu0 0
    %418 = vperm.xlu0 %417, %v94
    %v419 = vpop.permute.xlu0 %418
    %421 = vmatpush.msra.mxu0 %v340
    %422 = vmatpush.msra.mxu0 %v339
    %423 = vmatpush.msra.mxu0 %v338
    %424 = vmatpush.msra.mxu0 %v337
    %425 = vmatpush.msra.mxu0 %v336
    %426 = vmatpush.msra.mxu0 %v335
    %427 = vmatpush.msra.mxu0 %v334
    %428 = vmatpush.msra.mxu0 %v333
    %429 = vmatpush.msra.mxu0 %v332
    %430 = vmatpush.msra.mxu0 %v331
    %431 = vmatpush.msra.mxu0 %v330
    %432 = vmatpush.msra.mxu0 %v329
    %433 = vmatpush.msra.mxu0 %v328
    %434 = vmatpush.msra.mxu0 %v327
    %435 = vmatpush.msra.mxu0 %v326
    %436 = vmatpush.msra.mxu0 %v325
    %437 = vmatmul.f32.gmra.mxu0 %v63
    %v438 = vpop.f32.mrf.mxu0
    %v439 = vadd.f32 %v344, %v438
    %440 = vmatmul.f32.gmra.mxu0 %v64
    %v441 = vpop.f32.mrf.mxu0
    %v442 = vadd.f32 %v349, %v441
    %443 = vmatmul.f32.gmra.mxu0 %v65
    %v444 = vpop.f32.mrf.mxu0
    %v445 = vadd.f32 %v354, %v444
    %446 = vmatmul.f32.gmra.mxu0 %v66
    %v447 = vpop.f32.mrf.mxu0
    %v448 = vadd.f32 %v359, %v447
    %449 = vmatmul.f32.gmra.mxu0 %v67
    %v450 = vpop.f32.mrf.mxu0
    %v451 = vadd.f32 %v364, %v450
    %452 = vmatmul.f32.gmra.mxu0 %v68
    %v453 = vpop.f32.mrf.mxu0
    %v454 = vadd.f32 %v369, %v453
    %455 = vmatmul.f32.gmra.mxu0 %v69
    %v456 = vpop.f32.mrf.mxu0
    %v457 = vadd.f32 %v374, %v456
    %458 = vmatmul.f32.gmra.mxu0 %v70
    %v459 = vpop.f32.mrf.mxu0
    %v460 = vadd.f32 %v379, %v459
    %461 = vmatmul.f32.gmra.mxu0 %v71
    %v462 = vpop.f32.mrf.mxu0
    %v463 = vadd.f32 %v384, %v462
    %464 = vmatmul.f32.gmra.mxu0 %v72
    %v465 = vpop.f32.mrf.mxu0
    %v466 = vadd.f32 %v389, %v465
    %467 = vmatmul.f32.gmra.mxu0 %v73
    %v468 = vpop.f32.mrf.mxu0
    %v469 = vadd.f32 %v394, %v468
    %470 = vmatmul.f32.gmra.mxu0 %v74
    %v471 = vpop.f32.mrf.mxu0
    %v472 = vadd.f32 %v399, %v471
    %473 = vmatmul.f32.gmra.mxu0 %v75
    %v474 = vpop.f32.mrf.mxu0
    %v475 = vadd.f32 %v404, %v474
    %476 = vmatmul.f32.gmra.mxu0 %v76
    %v477 = vpop.f32.mrf.mxu0
    %v478 = vadd.f32 %v409, %v477
    %479 = vmatmul.f32.gmra.mxu0 %v77
    %v480 = vpop.f32.mrf.mxu0
    %v481 = vadd.f32 %v414, %v480
    %482 = vmatmul.f32.gmra.mxu0 %v78
    %v483 = vpop.f32.mrf.mxu0
    %v484 = vadd.f32 %v419, %v483
    %485 = vdwg.mxu0
    %v486 = vmax.f32 %v439, 0.0
    %v487 = vmax.f32 %v442, 0.0
    %v488 = vmax.f32 %v445, 0.0
    %v489 = vmax.f32 %v448, 0.0
    %v490 = vmax.f32 %v451, 0.0
    %v491 = vmax.f32 %v454, 0.0
    %v492 = vmax.f32 %v457, 0.0
    %v493 = vmax.f32 %v460, 0.0
    %v494 = vmax.f32 %v463, 0.0
    %v495 = vmax.f32 %v466, 0.0
    %v496 = vmax.f32 %v469, 0.0
    %v497 = vmax.f32 %v472, 0.0
    %v498 = vmax.f32 %v475, 0.0
    %v499 = vmax.f32 %v478, 0.0
    %v500 = vmax.f32 %v481, 0.0
    %v501 = vmax.f32 %v484, 0.0
    %503 = vset.pattern.permute.xlu0 0
    %504 = vperm.xlu0 %503, %v111
    %v505 = vpop.permute.xlu0 %504
    %508 = vset.pattern.permute.xlu0 0
    %509 = vperm.xlu0 %508, %v112
    %v510 = vpop.permute.xlu0 %509
    %513 = vset.pattern.permute.xlu0 0
    %514 = vperm.xlu0 %513, %v113
    %v515 = vpop.permute.xlu0 %514
    %518 = vset.pattern.permute.xlu0 0
    %519 = vperm.xlu0 %518, %v114
    %v520 = vpop.permute.xlu0 %519
    %523 = vset.pattern.permute.xlu0 0
    %524 = vperm.xlu0 %523, %v115
    %v525 = vpop.permute.xlu0 %524
    %528 = vset.pattern.permute.xlu0 0
    %529 = vperm.xlu0 %528, %v116
    %v530 = vpop.permute.xlu0 %529
    %533 = vset.pattern.permute.xlu0 0
    %534 = vperm.xlu0 %533, %v117
    %v535 = vpop.permute.xlu0 %534
    %538 = vset.pattern.permute.xlu0 0
    %539 = vperm.xlu0 %538, %v118
    %v540 = vpop.permute.xlu0 %539
    %543 = vset.pattern.permute.xlu0 0
    %544 = vperm.xlu0 %543, %v119
    %v545 = vpop.permute.xlu0 %544
    %548 = vset.pattern.permute.xlu0 0
    %549 = vperm.xlu0 %548, %v120
    %v550 = vpop.permute.xlu0 %549
    %553 = vset.pattern.permute.xlu0 0
    %554 = vperm.xlu0 %553, %v121
    %v555 = vpop.permute.xlu0 %554
    %558 = vset.pattern.permute.xlu0 0
    %559 = vperm.xlu0 %558, %v122
    %v560 = vpop.permute.xlu0 %559
    %563 = vset.pattern.permute.xlu0 0
    %564 = vperm.xlu0 %563, %v123
    %v565 = vpop.permute.xlu0 %564
    %568 = vset.pattern.permute.xlu0 0
    %569 = vperm.xlu0 %568, %v124
    %v570 = vpop.permute.xlu0 %569
    %573 = vset.pattern.permute.xlu0 0
    %574 = vperm.xlu0 %573, %v125
    %v575 = vpop.permute.xlu0 %574
    %578 = vset.pattern.permute.xlu0 0
    %579 = vperm.xlu0 %578, %v126
    %v580 = vpop.permute.xlu0 %579
    %582 = vmatpush.msra.mxu0 %v501
    %583 = vmatpush.msra.mxu0 %v500
    %584 = vmatpush.msra.mxu0 %v499
    %585 = vmatpush.msra.mxu0 %v498
    %586 = vmatpush.msra.mxu0 %v497
    %587 = vmatpush.msra.mxu0 %v496
    %588 = vmatpush.msra.mxu0 %v495
    %589 = vmatpush.msra.mxu0 %v494
    %590 = vmatpush.msra.mxu0 %v493
    %591 = vmatpush.msra.mxu0 %v492
    %592 = vmatpush.msra.mxu0 %v491
    %593 = vmatpush.msra.mxu0 %v490
    %594 = vmatpush.msra.mxu0 %v489
    %595 = vmatpush.msra.mxu0 %v488
    %596 = vmatpush.msra.mxu0 %v487
    %597 = vmatpush.msra.mxu0 %v486
    %598 = vmatmul.f32.gmra.mxu0 %v95
    %v599 = vpop.f32.mrf.mxu0
    %v600 = vadd.f32 %v505, %v599
    %601 = vmatmul.f32.gmra.mxu0 %v96
    %v602 = vpop.f32.mrf.mxu0
    %v603 = vadd.f32 %v510, %v602
    %604 = vmatmul.f32.gmra.mxu0 %v97
    %v605 = vpop.f32.mrf.mxu0
    %v606 = vadd.f32 %v515, %v605
    %607 = vmatmul.f32.gmra.mxu0 %v98
    %v608 = vpop.f32.mrf.mxu0
    %v609 = vadd.f32 %v520, %v608
    %610 = vmatmul.f32.gmra.mxu0 %v99
    %v611 = vpop.f32.mrf.mxu0
    %v612 = vadd.f32 %v525, %v611
    %613 = vmatmul.f32.gmra.mxu0 %v100
    %v614 = vpop.f32.mrf.mxu0
    %v615 = vadd.f32 %v530, %v614
    %616 = vmatmul.f32.gmra.mxu0 %v101
    %v617 = vpop.f32.mrf.mxu0
    %v618 = vadd.f32 %v535, %v617
    %619 = vmatmul.f32.gmra.mxu0 %v102
    %v620 = vpop.f32.mrf.mxu0
    %v621 = vadd.f32 %v540, %v620
    %622 = vmatmul.f32.gmra.mxu0 %v103
    %v623 = vpop.f32.mrf.mxu0
    %v624 = vadd.f32 %v545, %v623
    %625 = vmatmul.f32.gmra.mxu0 %v104
    %v626 = vpop.f32.mrf.mxu0
    %v627 = vadd.f32 %v550, %v626
    %628 = vmatmul.f32.gmra.mxu0 %v105
    %v629 = vpop.f32.mrf.mxu0
    %v630 = vadd.f32 %v555, %v629
    %631 = vmatmul.f32.gmra.mxu0 %v106
    %v632 = vpop.f32.mrf.mxu0
    %v633 = vadd.f32 %v560, %v632
    %634 = vmatmul.f32.gmra.mxu0 %v107
    %v635 = vpop.f32.mrf.mxu0
    %v636 = vadd.f32 %v565, %v635
    %637 = vmatmul.f32.gmra.mxu0 %v108
    %v638 = vpop.f32.mrf.mxu0
    %v639 = vadd.f32 %v570, %v638
    %640 = vmatmul.f32.gmra.mxu0 %v109
    %v641 = vpop.f32.mrf.mxu0
    %v642 = vadd.f32 %v575, %v641
    %643 = vmatmul.f32.gmra.mxu0 %v110
    %v644 = vpop.f32.mrf.mxu0
    %v645 = vadd.f32 %v580, %v644
    %646 = vdwg.mxu0
    %v647 = vmax.f32 %v600, 0.0
    %v648 = vmax.f32 %v603, 0.0
    %v649 = vmax.f32 %v606, 0.0
    %v650 = vmax.f32 %v609, 0.0
    %v651 = vmax.f32 %v612, 0.0
    %v652 = vmax.f32 %v615, 0.0
    %v653 = vmax.f32 %v618, 0.0
    %v654 = vmax.f32 %v621, 0.0
    %v655 = vmax.f32 %v624, 0.0
    %v656 = vmax.f32 %v627, 0.0
    %v657 = vmax.f32 %v630, 0.0
    %v658 = vmax.f32 %v633, 0.0
    %v659 = vmax.f32 %v636, 0.0
    %v660 = vmax.f32 %v639, 0.0
    %v661 = vmax.f32 %v642, 0.0
    %v662 = vmax.f32 %v645, 0.0
    %664 = vset.pattern.permute.xlu0 0
    %665 = vperm.xlu0 %664, %v129
    %v666 = vpop.permute.xlu0 %665
    %669 = vset.pattern.permute.xlu0 0
    %670 = vperm.xlu0 %669, %v130
    %v671 = vpop.permute.xlu0 %670
    %673 = vmatpush.msra.mxu0 %v662
    %674 = vmatpush.msra.mxu0 %v661
    %675 = vmatpush.msra.mxu0 %v660
    %676 = vmatpush.msra.mxu0 %v659
    %677 = vmatpush.msra.mxu0 %v658
    %678 = vmatpush.msra.mxu0 %v657
    %679 = vmatpush.msra.mxu0 %v656
    %680 = vmatpush.msra.mxu0 %v655
    %681 = vmatpush.msra.mxu0 %v654
    %682 = vmatpush.msra.mxu0 %v653
    %683 = vmatpush.msra.mxu0 %v652
    %684 = vmatpush.msra.mxu0 %v651
    %685 = vmatpush.msra.mxu0 %v650
    %686 = vmatpush.msra.mxu0 %v649
    %687 = vmatpush.msra.mxu0 %v648
    %688 = vmatpush.msra.mxu0 %v647
    %689 = vmatmul.f32.gmra.mxu0 %v127
    %v690 = vpop.f32.mrf.mxu0
    %v691 = vadd.f32 %v666, %v690
    %692 = vmatmul.f32.gmra.mxu0 %v128
    %v693 = vpop.f32.mrf.mxu0
    %v694 = vadd.f32 %v671, %v693
    %695 = vdwg.mxu0
    %696 = vst [vmem:[%s2] sm:$0xff] %v691
    %697 = vst [vmem:[%s2 + $0x8] sm:$0xff] %v694
    // Predicated region
    $region14: #{boltzman_forward.1} parent=1 // pred_check
      _
    $region15: #{boltzman_forward.1} parent=1 // pred_check_branch
      %699 = sbr.rel (0) target = $region17
    $region16: #{boltzman_forward.1} parent=1 // pred_region
      _
    $region17: #{boltzman_forward.1} parent=1 // pred_fallthru
      _
    // Predicated region
    $region18: #{boltzman_forward.1} parent=1 // pred_check
      _
    $region19: #{boltzman_forward.1} parent=1 // pred_check_branch
      %701 = sbr.rel (0) target = $region21
    $region20: #{boltzman_forward.1} parent=1 // pred_region
      _
    $region21: #{boltzman_forward.1} parent=1 // pred_fallthru
      _
    %702 = vsyncpa [#allocation3], 1

</llo_original>
